<compile_context>
chip_gen: v5e
topology: v5e:2x2
jax: 0.10.0
libtpu: 0.0.40
codegen_flags: <defaults>
</compile_context>

<pallas_src>
import functools

import jax
import jax.numpy as jnp
from jax.experimental import pallas as pl
from jax.experimental.pallas import tpu as pltpu
from jax.scipy.linalg import block_diag


def _mlp_kernel(x_ref, w1_ref, b1_ref, w2_ref, b2_ref, w3_ref, b3_ref, o_ref):
    # x_ref: (tbp, p*d_in) bf16; weights are bf16 block-diagonal, biases f32.
    x = x_ref[...]

    # h1 = SiLU(x @ W1 + b1)        (dropout: identity in eval mode)
    h = jnp.dot(x, w1_ref[...], preferred_element_type=jnp.float32)
    h = h + b1_ref[...]
    h = h * jax.nn.sigmoid(h)       # f32 VPU/EUP (v5e-safe)

    # h2 = SiLU(h1 @ W2 + b2)       (dropout: identity in eval mode)
    h = jnp.dot(h.astype(jnp.bfloat16), w2_ref[...],
                preferred_element_type=jnp.float32)
    h = h + b2_ref[...]
    h = h * jax.nn.sigmoid(h)

    # out = h2 @ W3 + b3            (packed: N = p, not N = 1)
    out = jnp.dot(h.astype(jnp.bfloat16), w3_ref[...],
                  preferred_element_type=jnp.float32)
    o_ref[...] = (out + b3_ref[...]).astype(o_ref.dtype)


def _cdiv(a, b):
    return (a + b - 1) // b


def _round_up(n, m):
    return ((n + m - 1) // m) * m


@functools.partial(jax.jit, static_argnames=("pack", "max_rows_per_tile"))
def linear_regression_forward(x, params, *, pack=8, max_rows_per_tile=4096):
    """x: [B, d_in] (f32 or bf16) -> [B, 1] f32.

    pack: batch rows folded per MXU row (8 for v6e/v7x, 4 recommended on v5e).
    """
    w1, b1, w2, b2, w3, b3 = params
    B, d_in = x.shape
    p = pack
    d_o = w3.shape[1]                       # 1

    # ---- static tiling over packed rows (pad-aware, >=2 steps for v7x) ----
    bp = _cdiv(B, p)                        # packed rows needed
    tbp_max = max(8, max_rows_per_tile // p)
    n_steps = _cdiv(bp, tbp_max)
    if bp >= 16:                            # give both v7x TensorCores work
        n_steps = max(n_steps, 2)
    tbp = _round_up(_cdiv(bp, n_steps), 8)
    bp_pad = _round_up(bp, tbp)
    b_pad = bp_pad * p

    # ---- inputs: bf16 x, packed layout (row i holds rows i*p .. i*p+p-1) ----
    xb = x.astype(jnp.bfloat16)
    if b_pad != B:
        xb = jnp.pad(xb, ((0, b_pad - B), (0, 0)))
    xp = xb.reshape(bp_pad, p * d_in)

    # ---- block-diagonal bf16 weights / tiled biases, built once per call ----
    bd = lambda w: block_diag(*([w.astype(jnp.bfloat16)] * p))
    w1p, w2p, w3p = bd(w1), bd(w2), bd(w3)
    b1p, b2p, b3p = (jnp.tile(b, (1, p)) for b in (b1, b2, b3))

    const = lambda a: pl.BlockSpec(a.shape, lambda i: (0,) * a.ndim)
    out = pl.pallas_call(
        _mlp_kernel,
        out_shape=jax.ShapeDtypeStruct((bp_pad, p * d_o), jnp.float32),
        grid=(bp_pad // tbp,),
        in_specs=[
            pl.BlockSpec((tbp, p * d_in), lambda i: (i, 0)),   # x: streamed
            const(w1p), const(b1p), const(w2p), const(b2p),    # params: VMEM-resident
            const(w3p), const(b3p),
        ],
        out_specs=pl.BlockSpec((tbp, p * d_o), lambda i: (i, 0)),
        compiler_params=pltpu.CompilerParams(
            dimension_semantics=("parallel",)),                # v7x: split batch axis
    )(xp, w1p, b1p, w2p, b2p, w3p, b3p)

    # Un-pack: packed row i, cols j*d_o:(j+1)*d_o == original row i*p + j.
    return out.reshape(b_pad, d_o)[:B]


def init_params(key, input_dim):
    """Deterministic init mirroring nn.Linear default (U(-1/sqrt(fan_in), ...))."""
    def linear_init(k, fan_in, fan_out):
        kw, kb = jax.random.split(k)
        bound = 1.0 / jnp.sqrt(jnp.float32(fan_in))
        w = jax.random.uniform(kw, (fan_in, fan_out), jnp.float32, -bound, bound)
        b = jax.random.uniform(kb, (1, fan_out), jnp.float32, -bound, bound)
        return w, b

    k1, k2, k3 = jax.random.split(key, 3)
    w1, b1 = linear_init(k1, input_dim, 32)   # linear : input_dim -> 32
    w2, b2 = linear_init(k2, 32, 32)          # linear2: 32 -> 32
    w3, b3 = linear_init(k3, 32, 1)           # linear3: 32 -> 1
    return (w1, b1, w2, b2, w3, b3)


def reference_forward(x, params):
    """Pure-JAX reference mirroring the kernel numerics: bf16 MXU operands,
    f32 accumulation, f32 bias/SiLU, eval-mode dropout."""
    w1, b1, w2, b2, w3, b3 = params
    hi = jax.lax.Precision.HIGHEST
    bf = lambda a: a.astype(jnp.bfloat16).astype(jnp.float32)
    h = jnp.dot(bf(x), bf(w1), precision=hi) + b1
    h = h * jax.nn.sigmoid(h)
    h = jnp.dot(bf(h), bf(w2), precision=hi) + b2
    h = h * jax.nn.sigmoid(h)
    return jnp.dot(bf(h), bf(w3), precision=hi) + b3


if __name__ == "__main__":
    key = jax.random.PRNGKey(0)
    k_x, k_p = jax.random.split(key)

    input_dim = 16
    params = init_params(k_p, input_dim)

    # 1) Tiny batch: bp=1 packed row, single grid step, heavy pad (finite, sliced).
    x_tiny = jax.random.normal(k_x, (5, input_dim), dtype=jnp.float32)
    out_tiny = jax.block_until_ready(linear_regression_forward(x_tiny, params))
    ref_tiny = reference_forward(x_tiny, params)
    assert out_tiny.shape == (5, 1), out_tiny.shape
    assert jnp.allclose(out_tiny, ref_tiny, atol=1e-2, rtol=1e-2)

    # 2) Exact multiple of pack=8: B=64 -> 8 packed rows, grid (1,).
    x_small = jax.random.normal(k_x, (64, input_dim), dtype=jnp.float32)
    out_small = jax.block_until_ready(linear_regression_forward(x_small, params))
    ref_small = reference_forward(x_small, params)
    assert out_small.shape == (64, 1), out_small.shape
    assert jnp.allclose(out_small, ref_small, atol=1e-2, rtol=1e-2)

    # 3) Non-multiple batch: B=300 -> 38 packed rows, 2 grid steps + tail padding.
    x_big = jax.random.normal(k_x, (300, input_dim), dtype=jnp.float32)
    out_big = jax.block_until_ready(linear_regression_forward(x_big, params))
    ref_big = reference_forward(x_big, params)
    assert out_big.shape == (300, 1), out_big.shape
    assert jnp.allclose(out_big, ref_big, atol=1e-2, rtol=1e-2)

    print("KERNEL_OK")
</pallas_src>

<mosaic_0001>
module attributes {stable_mosaic.version = 11 : i64} {
  func.func @_mlp_kernel(%arg0: i32, %arg1: memref<8x128xbf16, #tpu.memory_space<vmem>>, %arg2: memref<128x256xbf16, #tpu.memory_space<vmem>>, %arg3: memref<1x256xf32, #tpu.memory_space<vmem>>, %arg4: memref<256x256xbf16, #tpu.memory_space<vmem>>, %arg5: memref<1x256xf32, #tpu.memory_space<vmem>>, %arg6: memref<256x8xbf16, #tpu.memory_space<vmem>>, %arg7: memref<1x8xf32, #tpu.memory_space<vmem>>, %arg8: memref<8x8xf32, #tpu.memory_space<vmem>>) attributes {dimension_semantics = [#tpu.dimension_semantics<parallel>], iteration_bounds = array<i64: 1>, scalar_prefetch = 0 : i64, scratch_operands = 0 : i64, tpu.core_type = #tpu.core_type<tc>, window_params = [{transform_indices = @transform_0, window_bounds = array<i64: 8, 128>}, {pipeline_mode = #tpu.pipeline_mode<synchronous>, transform_indices = @transform_1, window_bounds = array<i64: 128, 256>}, {pipeline_mode = #tpu.pipeline_mode<synchronous>, transform_indices = @transform_2, window_bounds = array<i64: 1, 256>}, {pipeline_mode = #tpu.pipeline_mode<synchronous>, transform_indices = @transform_3, window_bounds = array<i64: 256, 256>}, {pipeline_mode = #tpu.pipeline_mode<synchronous>, transform_indices = @transform_4, window_bounds = array<i64: 1, 256>}, {pipeline_mode = #tpu.pipeline_mode<synchronous>, transform_indices = @transform_5, window_bounds = array<i64: 256, 8>}, {pipeline_mode = #tpu.pipeline_mode<synchronous>, transform_indices = @transform_6, window_bounds = array<i64: 1, 8>}, {transform_indices = @transform_7, window_bounds = array<i64: 8, 8>}]} {
    %c0 = arith.constant 0 : index
    %c0_0 = arith.constant 0 : index
    %0 = vector.load %arg1[%c0, %c0_0] : memref<8x128xbf16, #tpu.memory_space<vmem>>, vector<8x128xbf16>
    %c0_1 = arith.constant 0 : index
    %c0_2 = arith.constant 0 : index
    %1 = vector.load %arg2[%c0_1, %c0_2] : memref<128x256xbf16, #tpu.memory_space<vmem>>, vector<128x256xbf16>
    %cst = arith.constant dense<0.000000e+00> : vector<8x256xf32>
    %2 = tpu.matmul %0, %1, %cst {dimension_numbers = #tpu.dot_dimension_numbers<[1], [0], [0], [1], [0, 0, 1, 1], [], []>} : vector<8x128xbf16>, vector<128x256xbf16>, vector<8x256xf32> -> vector<8x256xf32>
    %c0_3 = arith.constant 0 : index
    %c0_4 = arith.constant 0 : index
    %3 = vector.load %arg3[%c0_3, %c0_4] : memref<1x256xf32, #tpu.memory_space<vmem>>, vector<1x256xf32>
    %4 = vector.broadcast %3 : vector<1x256xf32> to vector<8x256xf32>
    %5 = arith.addf %2, %4 : vector<8x256xf32>
    %6 = arith.negf %5 : vector<8x256xf32>
    %7 = math.exp %6 : vector<8x256xf32>
    %cst_5 = arith.constant 1.000000e+00 : f32
    %8 = vector.broadcast %cst_5 : f32 to vector<8x256xf32>
    %9 = arith.addf %8, %7 : vector<8x256xf32>
    %10 = arith.divf %8, %9 : vector<8x256xf32>
    %11 = arith.mulf %5, %10 : vector<8x256xf32>
    %12 = arith.truncf %11 : vector<8x256xf32> to vector<8x256xbf16>
    %c0_6 = arith.constant 0 : index
    %c0_7 = arith.constant 0 : index
    %13 = vector.load %arg4[%c0_6, %c0_7] : memref<256x256xbf16, #tpu.memory_space<vmem>>, vector<256x256xbf16>
    %cst_8 = arith.constant dense<0.000000e+00> : vector<8x256xf32>
    %14 = tpu.matmul %12, %13, %cst_8 {dimension_numbers = #tpu.dot_dimension_numbers<[1], [0], [0], [1], [0, 0, 1, 1], [], []>} : vector<8x256xbf16>, vector<256x256xbf16>, vector<8x256xf32> -> vector<8x256xf32>
    %c0_9 = arith.constant 0 : index
    %c0_10 = arith.constant 0 : index
    %15 = vector.load %arg5[%c0_9, %c0_10] : memref<1x256xf32, #tpu.memory_space<vmem>>, vector<1x256xf32>
    %16 = vector.broadcast %15 : vector<1x256xf32> to vector<8x256xf32>
    %17 = arith.addf %14, %16 : vector<8x256xf32>
    %18 = arith.negf %17 : vector<8x256xf32>
    %19 = math.exp %18 : vector<8x256xf32>
    %cst_11 = arith.constant 1.000000e+00 : f32
    %20 = vector.broadcast %cst_11 : f32 to vector<8x256xf32>
    %21 = arith.addf %20, %19 : vector<8x256xf32>
    %22 = arith.divf %20, %21 : vector<8x256xf32>
    %23 = arith.mulf %17, %22 : vector<8x256xf32>
    %24 = arith.truncf %23 : vector<8x256xf32> to vector<8x256xbf16>
    %c0_12 = arith.constant 0 : index
    %c0_13 = arith.constant 0 : index
    %25 = vector.load %arg6[%c0_12, %c0_13] : memref<256x8xbf16, #tpu.memory_space<vmem>>, vector<256x8xbf16>
    %cst_14 = arith.constant dense<0.000000e+00> : vector<8x8xf32>
    %26 = tpu.matmul %24, %25, %cst_14 {dimension_numbers = #tpu.dot_dimension_numbers<[1], [0], [0], [1], [0, 0, 1, 1], [], []>} : vector<8x256xbf16>, vector<256x8xbf16>, vector<8x8xf32> -> vector<8x8xf32>
    %c0_15 = arith.constant 0 : index
    %c0_16 = arith.constant 0 : index
    %27 = vector.load %arg7[%c0_15, %c0_16] : memref<1x8xf32, #tpu.memory_space<vmem>>, vector<1x8xf32>
    %28 = vector.broadcast %27 : vector<1x8xf32> to vector<8x8xf32>
    %29 = arith.addf %26, %28 : vector<8x8xf32>
    %c0_17 = arith.constant 0 : index
    %c0_18 = arith.constant 0 : index
    %30 = vector.load %arg8[%c0_17, %c0_18] : memref<8x8xf32, #tpu.memory_space<vmem>>, vector<8x8xf32>
    tpu.vector_store %arg8[%c0_17, %c0_18], %29 {strides = array<i32>} : memref<8x8xf32, #tpu.memory_space<vmem>>, vector<8x8xf32>,
    return
  }
  func.func @transform_0(%arg0: i32) -> (i32, i32) {
    %c0_i32 = arith.constant 0 : i32
    %c0_i32_0 = arith.constant 0 : i32
    return %arg0, %c0_i32 : i32, i32
  }
  func.func @transform_1(%arg0: i32) -> (i32, i32) {
    %c0_i32 = arith.constant 0 : i32
    %c0_i32_0 = arith.constant 0 : i32
    %c0_i32_1 = arith.constant 0 : i32
    return %c0_i32, %c0_i32_0 : i32, i32
  }
  func.func @transform_2(%arg0: i32) -> (i32, i32) {
    %c0_i32 = arith.constant 0 : i32
    %c0_i32_0 = arith.constant 0 : i32
    %c0_i32_1 = arith.constant 0 : i32
    return %c0_i32, %c0_i32_0 : i32, i32
  }
  func.func @transform_3(%arg0: i32) -> (i32, i32) {
    %c0_i32 = arith.constant 0 : i32
    %c0_i32_0 = arith.constant 0 : i32
    %c0_i32_1 = arith.constant 0 : i32
    return %c0_i32, %c0_i32_0 : i32, i32
  }
  func.func @transform_4(%arg0: i32) -> (i32, i32) {
    %c0_i32 = arith.constant 0 : i32
    %c0_i32_0 = arith.constant 0 : i32
    %c0_i32_1 = arith.constant 0 : i32
    return %c0_i32, %c0_i32_0 : i32, i32
  }
  func.func @transform_5(%arg0: i32) -> (i32, i32) {
    %c0_i32 = arith.constant 0 : i32
    %c0_i32_0 = arith.constant 0 : i32
    %c0_i32_1 = arith.constant 0 : i32
    return %c0_i32, %c0_i32_0 : i32, i32
  }
  func.func @transform_6(%arg0: i32) -> (i32, i32) {
    %c0_i32 = arith.constant 0 : i32
    %c0_i32_0 = arith.constant 0 : i32
    %c0_i32_1 = arith.constant 0 : i32
    return %c0_i32, %c0_i32_0 : i32, i32
  }
  func.func @transform_7(%arg0: i32) -> (i32, i32) {
    %c0_i32 = arith.constant 0 : i32
    %c0_i32_0 = arith.constant 0 : i32
    return %arg0, %c0_i32 : i32, i32
  }
}

</mosaic_0001>

<llo_original>
// kernel: linear_regression_forward.1
$region0: #{linear_regression_forward.1}
  #allocation0 [shape = 'u32[]', space=smem, size = 0x4, offset = 0x4, fixed_abs, tag = 'smem constant byte address 0x4 - core index']
  #allocation1 [shape = 'u32[72,128]{1,0:T(1,128)}', space=vmem, size = 0x9000, scoped, tag = 'internal scratch']
  %s0 = inlined_call_operand.vmem [shape: bf16[8,128], index: 0, kind: input, shape index: {}]
  %s1 = inlined_call_operand.vmem [shape: bf16[128,256], index: 1, kind: input, shape index: {}]
  %s2 = inlined_call_operand.vmem [shape: f32[1,256], index: 2, kind: input, shape index: {}]
  %s3 = inlined_call_operand.vmem [shape: bf16[256,256], index: 3, kind: input, shape index: {}]
  %s4 = inlined_call_operand.vmem [shape: f32[1,256], index: 4, kind: input, shape index: {}]
  %s5 = inlined_call_operand.vmem [shape: bf16[256,8], index: 5, kind: input, shape index: {}]
  %s6 = inlined_call_operand.vmem [shape: f32[1,8], index: 6, kind: input, shape index: {}]
  %s7 = inlined_call_operand.vmem [shape: f32[8,8], index: 7, kind: output, shape index: {}]
  %s8 = sld [smem:[#allocation0]]
  $region38: #{linear_regression_forward.1} parent=0
    _
  %s10 = ssub.s32 1, %s8
  %s11 = scalar_select 0, %s10, %s8
  // Predicated region
  $region2: #{linear_regression_forward.1} parent=0 // pred_check
    _
  $region3: #{linear_regression_forward.1} parent=0 // pred_check_branch
    %13 = sbr.rel (0) target = $region5
  $region4: #{linear_regression_forward.1} parent=0 // pred_region
    _
  $region5: #{linear_regression_forward.1} parent=0 // pred_fallthru
    _
  // Predicated region
  $region6: #{linear_regression_forward.1} parent=0 // pred_check
    _
  $region7: #{linear_regression_forward.1} parent=0 // pred_check_branch
    %15 = sbr.rel (0) target = $region9
  $region8: #{linear_regression_forward.1} parent=0 // pred_region
    _
  $region9: #{linear_regression_forward.1} parent=0 // pred_fallthru
    _
  // Predicated region
  $region10: #{linear_regression_forward.1} parent=0 // pred_check
    _
  $region11: #{linear_regression_forward.1} parent=0 // pred_check_branch
    %17 = sbr.rel (0) target = $region13
  $region12: #{linear_regression_forward.1} parent=0 // pred_region
    _
  $region13: #{linear_regression_forward.1} parent=0 // pred_fallthru
    _
  // Predicated region
  $region14: #{linear_regression_forward.1} parent=0 // pred_check
    _
  $region15: #{linear_regression_forward.1} parent=0 // pred_check_branch
    %19 = sbr.rel (0) target = $region17
  $region16: #{linear_regression_forward.1} parent=0 // pred_region
    _
  $region17: #{linear_regression_forward.1} parent=0 // pred_fallthru
    _
  // Predicated region
  $region18: #{linear_regression_forward.1} parent=0 // pred_check
    _
  $region19: #{linear_regression_forward.1} parent=0 // pred_check_branch
    %21 = sbr.rel (0) target = $region21
  $region20: #{linear_regression_forward.1} parent=0 // pred_region
    _
  $region21: #{linear_regression_forward.1} parent=0 // pred_fallthru
    _
  // Predicated region
  $region22: #{linear_regression_forward.1} parent=0 // pred_check
    _
  $region23: #{linear_regression_forward.1} parent=0 // pred_check_branch
    %23 = sbr.rel (0) target = $region25
  $region24: #{linear_regression_forward.1} parent=0 // pred_region
    _
  $region25: #{linear_regression_forward.1} parent=0 // pred_fallthru
    _
  // Predicated region
  $region26: #{linear_regression_forward.1} parent=0 // pred_check
    _
  $region27: #{linear_regression_forward.1} parent=0 // pred_check_branch
    %25 = sbr.rel (0) target = $region29
  $region28: #{linear_regression_forward.1} parent=0 // pred_region
    _
  $region29: #{linear_regression_forward.1} parent=0 // pred_fallthru
    _
  %v26 = vld [vmem:[%s0] sm:$0xf]
  %v27 = vld [vmem:[%s1] sm:$0xff]
  %v28 = vld [vmem:[%s1 + $0x8] sm:$0xff]
  %v29 = vld [vmem:[%s1 + $0x10] sm:$0xff]
  %v30 = vld [vmem:[%s1 + $0x18] sm:$0xff]
  %v31 = vld [vmem:[%s1 + $0x20] sm:$0xff]
  %v32 = vld [vmem:[%s1 + $0x28] sm:$0xff]
  %v33 = vld [vmem:[%s1 + $0x30] sm:$0xff]
  %v34 = vld [vmem:[%s1 + $0x38] sm:$0xff]
  %v35 = vld [vmem:[%s1 + $0x40] sm:$0xff]
  %v36 = vld [vmem:[%s1 + $0x48] sm:$0xff]
  %v37 = vld [vmem:[%s1 + $0x50] sm:$0xff]
  %v38 = vld [vmem:[%s1 + $0x58] sm:$0xff]
  %v39 = vld [vmem:[%s1 + $0x60] sm:$0xff]
  %v40 = vld [vmem:[%s1 + $0x68] sm:$0xff]
  %v41 = vld [vmem:[%s1 + $0x70] sm:$0xff]
  %v42 = vld [vmem:[%s1 + $0x78] sm:$0xff]
  %v43 = vld [vmem:[%s2] sm:$0x3]
  %v45 = vperm.slane %v43, 0
  %v46 = vperm.slane %v43, 1
  %v65 = vunpack.c.l.b16 %v27
  %v66 = vunpack.c.h.b16 %v27
  %v67 = vunpack.c.l.b16 %v28
  %v68 = vunpack.c.h.b16 %v28
  %v69 = vunpack.c.l.b16 %v29
  %v70 = vunpack.c.h.b16 %v29
  %v71 = vunpack.c.l.b16 %v30
  %v72 = vunpack.c.h.b16 %v30
  %v73 = vunpack.c.l.b16 %v31
  %v74 = vunpack.c.h.b16 %v31
  %v75 = vunpack.c.l.b16 %v32
  %v76 = vunpack.c.h.b16 %v32
  %v77 = vunpack.c.l.b16 %v33
  %v78 = vunpack.c.h.b16 %v33
  %v79 = vunpack.c.l.b16 %v34
  %v80 = vunpack.c.h.b16 %v34
  %v81 = vunpack.c.l.b16 %v35
  %v82 = vunpack.c.h.b16 %v35
  %v83 = vunpack.c.l.b16 %v36
  %v84 = vunpack.c.h.b16 %v36
  %v85 = vunpack.c.l.b16 %v37
  %v86 = vunpack.c.h.b16 %v37
  %v87 = vunpack.c.l.b16 %v38
  %v88 = vunpack.c.h.b16 %v38
  %v89 = vunpack.c.l.b16 %v39
  %v90 = vunpack.c.h.b16 %v39
  %v91 = vunpack.c.l.b16 %v40
  %v92 = vunpack.c.h.b16 %v40
  %v93 = vunpack.c.l.b16 %v41
  %v94 = vunpack.c.h.b16 %v41
  %v95 = vunpack.c.l.b16 %v42
  %v96 = vunpack.c.h.b16 %v42
  %v97 = vpack.c.b16 %v67, %v65
  %v98 = vpack.c.b16 %v68, %v66
  %v99 = vpack.c.b16 %v71, %v69
  %v100 = vpack.c.b16 %v72, %v70
  %v101 = vpack.c.b16 %v75, %v73
  %v102 = vpack.c.b16 %v76, %v74
  %v103 = vpack.c.b16 %v79, %v77
  %v104 = vpack.c.b16 %v80, %v78
  %v105 = vpack.c.b16 %v83, %v81
  %v106 = vpack.c.b16 %v84, %v82
  %v107 = vpack.c.b16 %v87, %v85
  %v108 = vpack.c.b16 %v88, %v86
  %v109 = vpack.c.b16 %v91, %v89
  %v110 = vpack.c.b16 %v92, %v90
  %v111 = vpack.c.b16 %v95, %v93
  %v112 = vpack.c.b16 %v96, %v94
  %129 = vmatpush.bf16.msra.mxu0 %v111
  %130 = vmatpush.bf16.msra.mxu0 %v109
  %131 = vmatpush.bf16.msra.mxu0 %v107
  %132 = vmatpush.bf16.msra.mxu0 %v105
  %133 = vmatpush.bf16.msra.mxu0 %v103
  %134 = vmatpush.bf16.msra.mxu0 %v101
  %135 = vmatpush.bf16.msra.mxu0 %v99
  %136 = vmatpush.bf16.msra.mxu0 %v97
  %137 = vmatmul.bf16.gmra.mxu0 %v26
  %v138 = vpop.f32.mrf.mxu0
  %v139 = vadd.f32 %v45, %v138
  %v140 = vpop.f32.mrf.mxu0
  %141 = vdwg.mxu0
  %142 = vmatpush.bf16.msra.mxu0 %v112
  %143 = vmatpush.bf16.msra.mxu0 %v110
  %144 = vmatpush.bf16.msra.mxu0 %v108
  %145 = vmatpush.bf16.msra.mxu0 %v106
  %146 = vmatpush.bf16.msra.mxu0 %v104
  %147 = vmatpush.bf16.msra.mxu0 %v102
  %148 = vmatpush.bf16.msra.mxu0 %v100
  %149 = vmatpush.bf16.msra.mxu0 %v98
  %150 = vmatmul.bf16.gmra.mxu0 %v26
  %v151 = vpop.f32.mrf.mxu0
  %v152 = vadd.f32 %v46, %v151
  %v153 = vpop.f32.mrf.mxu0
  %154 = vdwg.mxu0
  %v155 = vxor.u32 %v139, 2147483648
  %v156 = vxor.u32 %v152, 2147483648
  %v157 = vmul.f32 %v155, 1.442695
  %v158 = vpow.pop %v157
  %v159 = vmul.f32 %v156, 1.442695
  %v160 = vpow.pop %v159
  %v161 = vadd.f32 %v158, 1.0
  %v162 = vadd.f32 %v160, 1.0
  %v163 = vrcp.pop %v161
  %v164 = vmul.f32 %v161, %v163
  %v165 = vsub.f32 1.0, %v164
  %v166 = vmul.f32 %v163, %v165
  %v167 = vadd.f32 %v163, %v166
  %vm168 = vweird.f32 %v161
  %vm169 = vweird.f32 %v163
  %vm170 = vmor %vm168, %vm169
  %v171 = vsel %vm170, %v163, %v167
  %v172 = vand.u32 2147483647, %v161
  %vm173 = vcmp.eq.f32.partialorder %v172, 8.507059e+37
  %v174 = vand.u32 %v161, 2147483648
  %v175 = vor.u32 1.1754944e-38, %v174
  %v176 = vsel %vm173, %v175, %v171
  %v177 = vmul.f32 1.0, %v176
  %v178 = vrcp.pop %v162
  %v179 = vmul.f32 %v162, %v178
  %v180 = vsub.f32 1.0, %v179
  %v181 = vmul.f32 %v178, %v180
  %v182 = vadd.f32 %v178, %v181
  %vm183 = vweird.f32 %v162
  %vm184 = vweird.f32 %v178
  %vm185 = vmor %vm183, %vm184
  %v186 = vsel %vm185, %v178, %v182
  %v187 = vand.u32 2147483647, %v162
  %vm188 = vcmp.eq.f32.partialorder %v187, 8.507059e+37
  %v189 = vand.u32 %v162, 2147483648
  %v190 = vor.u32 1.1754944e-38, %v189
  %v191 = vsel %vm188, %v190, %v186
  %v192 = vmul.f32 1.0, %v191
  %v193 = vmul.f32 %v139, %v177
  %v194 = vmul.f32 %v152, %v192
  %v195 = vpack.c.bf16 %v193, %v193
  %v196 = vpack.c.bf16 %v194, %v194
  %v197 = vld [vmem:[%s3] sm:$0xff]
  %v198 = vld [vmem:[%s3 + $0x8] sm:$0xff]
  %v199 = vld [vmem:[%s3 + $0x10] sm:$0xff]
  %v200 = vld [vmem:[%s3 + $0x18] sm:$0xff]
  %v201 = vld [vmem:[%s3 + $0x20] sm:$0xff]
  %v202 = vld [vmem:[%s3 + $0x28] sm:$0xff]
  %v203 = vld [vmem:[%s3 + $0x30] sm:$0xff]
  %v204 = vld [vmem:[%s3 + $0x38] sm:$0xff]
  %v205 = vld [vmem:[%s3 + $0x40] sm:$0xff]
  %v206 = vld [vmem:[%s3 + $0x48] sm:$0xff]
  %v207 = vld [vmem:[%s3 + $0x50] sm:$0xff]
  %v208 = vld [vmem:[%s3 + $0x58] sm:$0xff]
  %v209 = vld [vmem:[%s3 + $0x60] sm:$0xff]
  %v210 = vld [vmem:[%s3 + $0x68] sm:$0xff]
  %v211 = vld [vmem:[%s3 + $0x70] sm:$0xff]
  %v212 = vld [vmem:[%s3 + $0x78] sm:$0xff]
  %v213 = vld [vmem:[%s3 + $0x80] sm:$0xff]
  %v214 = vld [vmem:[%s3 + $0x88] sm:$0xff]
  %v215 = vld [vmem:[%s3 + $0x90] sm:$0xff]
  %v216 = vld [vmem:[%s3 + $0x98] sm:$0xff]
  %v217 = vld [vmem:[%s3 + $0xa0] sm:$0xff]
  %v218 = vld [vmem:[%s3 + $0xa8] sm:$0xff]
  %v219 = vld [vmem:[%s3 + $0xb0] sm:$0xff]
  %v220 = vld [vmem:[%s3 + $0xb8] sm:$0xff]
  %v221 = vld [vmem:[%s3 + $0xc0] sm:$0xff]
  %v222 = vld [vmem:[%s3 + $0xc8] sm:$0xff]
  %v223 = vld [vmem:[%s3 + $0xd0] sm:$0xff]
  %v224 = vld [vmem:[%s3 + $0xd8] sm:$0xff]
  %v225 = vld [vmem:[%s3 + $0xe0] sm:$0xff]
  %v226 = vld [vmem:[%s3 + $0xe8] sm:$0xff]
  %v227 = vld [vmem:[%s3 + $0xf0] sm:$0xff]
  %v228 = vld [vmem:[%s3 + $0xf8] sm:$0xff]
  %v229 = vld [vmem:[%s4] sm:$0x3]
  %v231 = vperm.slane %v229, 0
  %v232 = vperm.slane %v229, 1
  %v267 = vunpack.c.l.b16 %v197
  %v268 = vunpack.c.h.b16 %v197
  %v269 = vunpack.c.l.b16 %v198
  %v270 = vunpack.c.h.b16 %v198
  %v271 = vunpack.c.l.b16 %v199
  %v272 = vunpack.c.h.b16 %v199
  %v273 = vunpack.c.l.b16 %v200
  %v274 = vunpack.c.h.b16 %v200
  %v275 = vunpack.c.l.b16 %v201
  %v276 = vunpack.c.h.b16 %v201
  %v277 = vunpack.c.l.b16 %v202
  %v278 = vunpack.c.h.b16 %v202
  %v279 = vunpack.c.l.b16 %v203
  %v280 = vunpack.c.h.b16 %v203
  %v281 = vunpack.c.l.b16 %v204
  %v282 = vunpack.c.h.b16 %v204
  %v283 = vunpack.c.l.b16 %v205
  %v284 = vunpack.c.h.b16 %v205
  %v285 = vunpack.c.l.b16 %v206
  %v286 = vunpack.c.h.b16 %v206
  %v287 = vunpack.c.l.b16 %v207
  %v288 = vunpack.c.h.b16 %v207
  %v289 = vunpack.c.l.b16 %v208
  %v290 = vunpack.c.h.b16 %v208
  %v291 = vunpack.c.l.b16 %v209
  %v292 = vunpack.c.h.b16 %v209
  %v293 = vunpack.c.l.b16 %v210
  %v294 = vunpack.c.h.b16 %v210
  %v295 = vunpack.c.l.b16 %v211
  %v296 = vunpack.c.h.b16 %v211
  %v297 = vunpack.c.l.b16 %v212
  %v298 = vunpack.c.h.b16 %v212
  %v299 = vunpack.c.l.b16 %v213
  %v300 = vunpack.c.h.b16 %v213
  %v301 = vunpack.c.l.b16 %v214
  %v302 = vunpack.c.h.b16 %v214
  %v303 = vunpack.c.l.b16 %v215
  %v304 = vunpack.c.h.b16 %v215
  %v305 = vunpack.c.l.b16 %v216
  %v306 = vunpack.c.h.b16 %v216
  %v307 = vunpack.c.l.b16 %v217
  %v308 = vunpack.c.h.b16 %v217
  %v309 = vunpack.c.l.b16 %v218
  %v310 = vunpack.c.h.b16 %v218
  %v311 = vunpack.c.l.b16 %v219
  %v312 = vunpack.c.h.b16 %v219
  %v313 = vunpack.c.l.b16 %v220
  %v314 = vunpack.c.h.b16 %v220
  %v315 = vunpack.c.l.b16 %v221
  %v316 = vunpack.c.h.b16 %v221
  %v317 = vunpack.c.l.b16 %v222
  %v318 = vunpack.c.h.b16 %v222
  %v319 = vunpack.c.l.b16 %v223
  %v320 = vunpack.c.h.b16 %v223
  %v321 = vunpack.c.l.b16 %v224
  %v322 = vunpack.c.h.b16 %v224
  %v323 = vunpack.c.l.b16 %v225
  %v324 = vunpack.c.h.b16 %v225
  %v325 = vunpack.c.l.b16 %v226
  %v326 = vunpack.c.h.b16 %v226
  %v327 = vunpack.c.l.b16 %v227
  %v328 = vunpack.c.h.b16 %v227
  %v329 = vunpack.c.l.b16 %v228
  %v330 = vunpack.c.h.b16 %v228
  %v331 = vpack.c.b16 %v269, %v267
  %v332 = vpack.c.b16 %v270, %v268
  %v333 = vpack.c.b16 %v273, %v271
  %v334 = vpack.c.b16 %v274, %v272
  %v335 = vpack.c.b16 %v277, %v275
  %v336 = vpack.c.b16 %v278, %v276
  %v337 = vpack.c.b16 %v281, %v279
  %v338 = vpack.c.b16 %v282, %v280
  %v339 = vpack.c.b16 %v285, %v283
  %v340 = vpack.c.b16 %v286, %v284
  %v341 = vpack.c.b16 %v289, %v287
  %v342 = vpack.c.b16 %v290, %v288
  %v343 = vpack.c.b16 %v293, %v291
  %v344 = vpack.c.b16 %v294, %v292
  %v345 = vpack.c.b16 %v297, %v295
  %v346 = vpack.c.b16 %v298, %v296
  %v347 = vpack.c.b16 %v301, %v299
  %v348 = vpack.c.b16 %v302, %v300
  %v349 = vpack.c.b16 %v305, %v303
  %v350 = vpack.c.b16 %v306, %v304
  %v351 = vpack.c.b16 %v309, %v307
  %v352 = vpack.c.b16 %v310, %v308
  %v353 = vpack.c.b16 %v313, %v311
  %v354 = vpack.c.b16 %v314, %v312
  %v355 = vpack.c.b16 %v317, %v315
  %v356 = vpack.c.b16 %v318, %v316
  %v357 = vpack.c.b16 %v321, %v319
  %v358 = vpack.c.b16 %v322, %v320
  %v359 = vpack.c.b16 %v325, %v323
  %v360 = vpack.c.b16 %v326, %v324
  %v361 = vpack.c.b16 %v329, %v327
  %v362 = vpack.c.b16 %v330, %v328
  %395 = vmatpush.bf16.msra.mxu0 %v345
  %396 = vmatpush.bf16.msra.mxu0 %v343
  %397 = vmatpush.bf16.msra.mxu0 %v341
  %398 = vmatpush.bf16.msra.mxu0 %v339
  %399 = vmatpush.bf16.msra.mxu0 %v337
  %400 = vmatpush.bf16.msra.mxu0 %v335
  %401 = vmatpush.bf16.msra.mxu0 %v333
  %402 = vmatpush.bf16.msra.mxu0 %v331
  %403 = vmatmul.bf16.gmra.mxu0 %v195
  %v404 = vpop.f32.mrf.mxu0
  %v405 = vadd.f32 %v231, %v404
  %v406 = vpop.f32.mrf.mxu0
  %407 = vdwg.mxu0
  %408 = vmatpush.bf16.msra.mxu0 %v361
  %409 = vmatpush.bf16.msra.mxu0 %v359
  %410 = vmatpush.bf16.msra.mxu0 %v357
  %411 = vmatpush.bf16.msra.mxu0 %v355
  %412 = vmatpush.bf16.msra.mxu0 %v353
  %413 = vmatpush.bf16.msra.mxu0 %v351
  %414 = vmatpush.bf16.msra.mxu0 %v349
  %415 = vmatpush.bf16.msra.mxu0 %v347
  %416 = vmatmul.bf16.gmra.mxu0 %v196
  %v417 = vpop.f32.mrf.mxu0
  %v418 = vadd.f32 %v405, %v417
  %v419 = vpop.f32.mrf.mxu0
  %420 = vdwg.mxu0
  %421 = vmatpush.bf16.msra.mxu0 %v346
  %422 = vmatpush.bf16.msra.mxu0 %v344
  %423 = vmatpush.bf16.msra.mxu0 %v342
  %424 = vmatpush.bf16.msra.mxu0 %v340
  %425 = vmatpush.bf16.msra.mxu0 %v338
  %426 = vmatpush.bf16.msra.mxu0 %v336
  %427 = vmatpush.bf16.msra.mxu0 %v334
  %428 = vmatpush.bf16.msra.mxu0 %v332
  %429 = vmatmul.bf16.gmra.mxu0 %v195
  %v430 = vpop.f32.mrf.mxu0
  %v431 = vadd.f32 %v232, %v430
  %v432 = vpop.f32.mrf.mxu0
  %433 = vdwg.mxu0
  %434 = vmatpush.bf16.msra.mxu0 %v362
  %435 = vmatpush.bf16.msra.mxu0 %v360
  %436 = vmatpush.bf16.msra.mxu0 %v358
  %437 = vmatpush.bf16.msra.mxu0 %v356
  %438 = vmatpush.bf16.msra.mxu0 %v354
  %439 = vmatpush.bf16.msra.mxu0 %v352
  %440 = vmatpush.bf16.msra.mxu0 %v350
  %441 = vmatpush.bf16.msra.mxu0 %v348
  %442 = vmatmul.bf16.gmra.mxu0 %v196
  %v443 = vpop.f32.mrf.mxu0
  %v444 = vadd.f32 %v431, %v443
  %v445 = vpop.f32.mrf.mxu0
  %446 = vdwg.mxu0
  %v447 = vxor.u32 %v418, 2147483648
  %v448 = vxor.u32 %v444, 2147483648
  %v449 = vmul.f32 %v447, 1.442695
  %v450 = vpow.pop %v449
  %v451 = vmul.f32 %v448, 1.442695
  %v452 = vpow.pop %v451
  %v453 = vadd.f32 %v450, 1.0
  %v454 = vadd.f32 %v452, 1.0
  %v455 = vrcp.pop %v453
  %v456 = vmul.f32 %v453, %v455
  %v457 = vsub.f32 1.0, %v456
  %v458 = vmul.f32 %v455, %v457
  %v459 = vadd.f32 %v455, %v458
  %vm460 = vweird.f32 %v453
  %vm461 = vweird.f32 %v455
  %vm462 = vmor %vm460, %vm461
  %v463 = vsel %vm462, %v455, %v459
  %v464 = vand.u32 2147483647, %v453
  %vm465 = vcmp.eq.f32.partialorder %v464, 8.507059e+37
  %v466 = vand.u32 %v453, 2147483648
  %v467 = vor.u32 1.1754944e-38, %v466
  %v468 = vsel %vm465, %v467, %v463
  %v469 = vmul.f32 1.0, %v468
  %v470 = vrcp.pop %v454
  %v471 = vmul.f32 %v454, %v470
  %v472 = vsub.f32 1.0, %v471
  %v473 = vmul.f32 %v470, %v472
  %v474 = vadd.f32 %v470, %v473
  %vm475 = vweird.f32 %v454
  %vm476 = vweird.f32 %v470
  %vm477 = vmor %vm475, %vm476
  %v478 = vsel %vm477, %v470, %v474
  %v479 = vand.u32 2147483647, %v454
  %vm480 = vcmp.eq.f32.partialorder %v479, 8.507059e+37
  %v481 = vand.u32 %v454, 2147483648
  %v482 = vor.u32 1.1754944e-38, %v481
  %v483 = vsel %vm480, %v482, %v478
  %v484 = vmul.f32 1.0, %v483
  %v485 = vmul.f32 %v418, %v469
  %v486 = vmul.f32 %v444, %v484
  %v487 = vpack.c.bf16 %v485, %v485
  %v488 = vpack.c.bf16 %v486, %v486
  %v489 = vld [vmem:[%s5] sm:$0xf]
  %v490 = vld [vmem:[%s5 + $0x4] sm:$0xf]
  %v491 = vld [vmem:[%s5 + $0x8] sm:$0xf]
  %v492 = vld [vmem:[%s5 + $0xc] sm:$0xf]
  %v493 = vld [vmem:[%s5 + $0x10] sm:$0xf]
  %v494 = vld [vmem:[%s5 + $0x14] sm:$0xf]
  %v495 = vld [vmem:[%s5 + $0x18] sm:$0xf]
  %v496 = vld [vmem:[%s5 + $0x1c] sm:$0xf]
  %v497 = vld [vmem:[%s5 + $0x20] sm:$0xf]
  %v498 = vld [vmem:[%s5 + $0x24] sm:$0xf]
  %v499 = vld [vmem:[%s5 + $0x28] sm:$0xf]
  %v500 = vld [vmem:[%s5 + $0x2c] sm:$0xf]
  %v501 = vld [vmem:[%s5 + $0x30] sm:$0xf]
  %v502 = vld [vmem:[%s5 + $0x34] sm:$0xf]
  %v503 = vld [vmem:[%s5 + $0x38] sm:$0xf]
  %v504 = vld [vmem:[%s5 + $0x3c] sm:$0xf]
  %v505 = vld [vmem:[%s5 + $0x40] sm:$0xf]
  %v506 = vld [vmem:[%s5 + $0x44] sm:$0xf]
  %v507 = vld [vmem:[%s5 + $0x48] sm:$0xf]
  %v508 = vld [vmem:[%s5 + $0x4c] sm:$0xf]
  %v509 = vld [vmem:[%s5 + $0x50] sm:$0xf]
  %v510 = vld [vmem:[%s5 + $0x54] sm:$0xf]
  %v511 = vld [vmem:[%s5 + $0x58] sm:$0xf]
  %v512 = vld [vmem:[%s5 + $0x5c] sm:$0xf]
  %v513 = vld [vmem:[%s5 + $0x60] sm:$0xf]
  %v514 = vld [vmem:[%s5 + $0x64] sm:$0xf]
  %v515 = vld [vmem:[%s5 + $0x68] sm:$0xf]
  %v516 = vld [vmem:[%s5 + $0x6c] sm:$0xf]
  %v517 = vld [vmem:[%s5 + $0x70] sm:$0xf]
  %v518 = vld [vmem:[%s5 + $0x74] sm:$0xf]
  %v519 = vld [vmem:[%s5 + $0x78] sm:$0xf]
  %v520 = vld [vmem:[%s5 + $0x7c] sm:$0xf]
  %v521 = vld [vmem:[%s6] sm:$0x1]
  %v523 = vperm.slane %v521, 0
  %v557 = vunpack.c.l.b16 %v489
  %v558 = vunpack.c.l.b16 %v490
  %v559 = vunpack.c.l.b16 %v491
  %v560 = vunpack.c.l.b16 %v492
  %v561 = vunpack.c.l.b16 %v493
  %v562 = vunpack.c.l.b16 %v494
  %v563 = vunpack.c.l.b16 %v495
  %v564 = vunpack.c.l.b16 %v496
  %v565 = vunpack.c.l.b16 %v497
  %v566 = vunpack.c.l.b16 %v498
  %v567 = vunpack.c.l.b16 %v499
  %v568 = vunpack.c.l.b16 %v500
  %v569 = vunpack.c.l.b16 %v501
  %v570 = vunpack.c.l.b16 %v502
  %v571 = vunpack.c.l.b16 %v503
  %v572 = vunpack.c.l.b16 %v504
  %v573 = vunpack.c.l.b16 %v505
  %v574 = vunpack.c.l.b16 %v506
  %v575 = vunpack.c.l.b16 %v507
  %v576 = vunpack.c.l.b16 %v508
  %v577 = vunpack.c.l.b16 %v509
  %v578 = vunpack.c.l.b16 %v510
  %v579 = vunpack.c.l.b16 %v511
  %v580 = vunpack.c.l.b16 %v512
  %v581 = vunpack.c.l.b16 %v513
  %v582 = vunpack.c.l.b16 %v514
  %v583 = vunpack.c.l.b16 %v515
  %v584 = vunpack.c.l.b16 %v516
  %v585 = vunpack.c.l.b16 %v517
  %v586 = vunpack.c.l.b16 %v518
  %v587 = vunpack.c.l.b16 %v519
  %v588 = vunpack.c.l.b16 %v520
  %v589 = vpack.c.b16 %v558, %v557
  %v590 = vpack.c.b16 %v560, %v559
  %v591 = vpack.c.b16 %v562, %v561
  %v592 = vpack.c.b16 %v564, %v563
  %v593 = vpack.c.b16 %v566, %v565
  %v594 = vpack.c.b16 %v568, %v567
  %v595 = vpack.c.b16 %v570, %v569
  %v596 = vpack.c.b16 %v572, %v571
  %v597 = vpack.c.b16 %v574, %v573
  %v598 = vpack.c.b16 %v576, %v575
  %v599 = vpack.c.b16 %v578, %v577
  %v600 = vpack.c.b16 %v580, %v579
  %v601 = vpack.c.b16 %v582, %v581
  %v602 = vpack.c.b16 %v584, %v583
  %v603 = vpack.c.b16 %v586, %v585
  %v604 = vpack.c.b16 %v588, %v587
  %621 = vmatpush.bf16.msra.mxu0 %v596
  %622 = vmatpush.bf16.msra.mxu0 %v595
  %623 = vmatpush.bf16.msra.mxu0 %v594
  %624 = vmatpush.bf16.msra.mxu0 %v593
  %625 = vmatpush.bf16.msra.mxu0 %v592
  %626 = vmatpush.bf16.msra.mxu0 %v591
  %627 = vmatpush.bf16.msra.mxu0 %v590
  %628 = vmatpush.bf16.msra.mxu0 %v589
  %629 = vmatmul.bf16.gmra.mxu0 %v487
  %v630 = vpop.f32.mrf.mxu0
  %v631 = vadd.f32 %v523, %v630
  %v632 = vpop.f32.mrf.mxu0
  %633 = vdwg.mxu0
  %634 = vmatpush.bf16.msra.mxu0 %v604
  %635 = vmatpush.bf16.msra.mxu0 %v603
  %636 = vmatpush.bf16.msra.mxu0 %v602
  %637 = vmatpush.bf16.msra.mxu0 %v601
  %638 = vmatpush.bf16.msra.mxu0 %v600
  %639 = vmatpush.bf16.msra.mxu0 %v599
  %640 = vmatpush.bf16.msra.mxu0 %v598
  %641 = vmatpush.bf16.msra.mxu0 %v597
  %642 = vmatmul.bf16.gmra.mxu0 %v488
  %v643 = vpop.f32.mrf.mxu0
  %v644 = vadd.f32 %v631, %v643
  %v645 = vpop.f32.mrf.mxu0
  %646 = vdwg.mxu0
  %vm647 = vcmask 64512
  %648 = vst.msk [vmem:[%s7] sm:$0xff] %vm647, %v644
  // Predicated region
  $region30: #{linear_regression_forward.1} parent=0 // pred_check
    _
  $region31: #{linear_regression_forward.1} parent=0 // pred_check_branch
    %650 = sbr.rel (0) target = $region33
  $region32: #{linear_regression_forward.1} parent=0 // pred_region
    _
  $region33: #{linear_regression_forward.1} parent=0 // pred_fallthru
    _
  // Predicated region
  $region34: #{linear_regression_forward.1} parent=0 // pred_check
    _
  $region35: #{linear_regression_forward.1} parent=0 // pred_check_branch
    %652 = sbr.rel (0) target = $region37
  $region36: #{linear_regression_forward.1} parent=0 // pred_region
    _
  $region37: #{linear_regression_forward.1} parent=0 // pred_fallthru
    _

</llo_original>
